<compile_context>
chip_gen: v7x
topology: tpu7x:2x2x1
jax: 0.10.0
libtpu: 0.0.40
codegen_flags: <defaults>
</compile_context>

<pallas_src>
import math

import jax
import jax.numpy as jnp
from jax.experimental import pallas as pl
from jax.experimental.pallas import tpu as pltpu


def _bias_add_kernel(x_ref, b_ref, o_ref):
    # Pure VPU elementwise add; b_ref is (1, lane) or (tile_rows, lane) and
    # broadcasts against the x block.
    o_ref[...] = x_ref[...] + b_ref[...]


def _run_bias_kernel(x2d, b2d, tile_rows):
    rows, lane = x2d.shape
    itemsize = jnp.dtype(x2d.dtype).itemsize
    grid = (pl.cdiv(rows, tile_rows),)
    cost = pl.CostEstimate(
        flops=rows * lane,
        transcendentals=0,
        bytes_accessed=2 * rows * lane * itemsize + b2d.size * itemsize,
    )
    return pl.pallas_call(
        _bias_add_kernel,
        out_shape=jax.ShapeDtypeStruct((rows, lane), x2d.dtype),
        grid_spec=pltpu.PrefetchScalarGridSpec(
            num_scalar_prefetch=0,
            grid=grid,
            in_specs=[
                pl.BlockSpec((tile_rows, lane), lambda i: (i, 0)),
                # Constant (0, 0) index map -> bias block stays resident in
                # VMEM, no per-step re-fetch.
                pl.BlockSpec((b2d.shape[0], lane), lambda i: (0, 0)),
            ],
            out_specs=pl.BlockSpec((tile_rows, lane), lambda i: (i, 0)),
        ),
        compiler_params=pltpu.CompilerParams(
            dimension_semantics=("parallel",),      # megacore sharding on v7x
            vmem_limit_bytes=32 * 1024 * 1024,      # needed for 2 MiB blocks on v5e
        ),
        cost_estimate=cost,
    )(x2d, b2d)


def bias_forward(x: jax.Array, bias: jax.Array, *,
                 target_block_bytes: int = 2 * 1024 * 1024,
                 max_block_bytes: int = 4 * 1024 * 1024,
                 min_kernel_bytes: int = 256 * 1024) -> jax.Array:
    """x: any shape (..., size); bias: (size,). Returns x + bias."""
    size = bias.shape[0]
    assert x.shape[-1] == size, "last dim of x must equal bias size"

    out_dtype = jnp.result_type(x.dtype, bias.dtype)
    x = x.astype(out_dtype)
    bias = bias.astype(out_dtype)
    itemsize = jnp.dtype(out_dtype).itemsize
    orig_shape = x.shape

    # --- Tiny-input fast path: kernel launch/wrapper overhead dominates. ----
    if x.size * itemsize < min_kernel_bytes:
        return x + bias

    x2 = x.reshape(-1, size)
    rows = x2.shape[0]

    sub = max(8, 32 // itemsize)            # native packed-sublane multiple
    per = math.lcm(size, 128)               # bias-pattern period (elements)
    q_rows = per // size                    # logical rows per period
    l_rows = per // 128                     # 128-lane rows per period
    quantum = math.lcm(l_rows, sub)         # tile_rows must be a multiple
    block_budget = min(target_block_bytes, max_block_bytes)

    use_repack = (quantum * 128 * itemsize <= max_block_bytes) and (rows >= q_rows)

    if use_repack:
        lane = 128
        bulk = (rows // q_rows) * q_rows            # prefix we run the kernel on
        bulk_rows128 = (bulk * size) // 128

        # Byte-capped, dtype/period-aware row tile.
        tile_rows = max(quantum,
                        (block_budget // (lane * itemsize)) // quantum * quantum)
        # Don't allocate blocks far larger than the array.
        tile_rows = min(tile_rows,
                        ((bulk_rows128 + quantum - 1) // quantum) * quantum)
        # Guarantee >= 2 grid steps so v7x's two TensorCores both get work.
        if bulk_rows128 >= 2 * quantum:
            half = ((bulk_rows128 // 2 + quantum - 1) // quantum) * quantum
            tile_rows = min(tile_rows, half)

        # Bias slab: one period (or one full block when the period spans
        # multiple lane rows).  Block starts are period-aligned, so the same
        # slab is correct for every grid step.
        if l_rows == 1:
            b2d = jnp.tile(bias, 128 // size).reshape(1, 128)
        else:
            b2d = jnp.tile(bias, (tile_rows * 128) // size).reshape(tile_rows, 128)

        x_bulk = x2[:bulk].reshape(bulk_rows128, 128)     # free reshape (contiguous)
        out_bulk = _run_bias_kernel(x_bulk, b2d, tile_rows).reshape(bulk, size)

        if bulk == rows:
            return out_bulk.reshape(orig_shape)
        # < q_rows leftover logical rows: plain XLA add, then stitch.
        out_rem = x2[bulk:] + bias
        return jnp.concatenate([out_bulk, out_rem], axis=0).reshape(orig_shape)

    # --- Fallback: direct (tile_rows, size) tiling, no repack. ---------------
    lane = size
    tile_rows = max(sub, (block_budget // (lane * itemsize)) // sub * sub)
    tile_rows = min(tile_rows, ((rows + sub - 1) // sub) * sub)
    if rows >= 2 * sub:
        half = ((rows // 2 + sub - 1) // sub) * sub
        tile_rows = min(tile_rows, half)
    b2d = bias.reshape(1, size)
    out = _run_bias_kernel(x2, b2d, tile_rows)
    return out.reshape(orig_shape)


if __name__ == "__main__":
    key = jax.random.PRNGKey(0)
    kx, kb, kx2, kx3, kx4 = jax.random.split(key, 5)

    # Module: Bias(size) with size = latent_dim = 32.
    size = 32
    batch, seq = 2, 8

    x = jax.random.normal(kx, (batch, seq, size), dtype=jnp.float32)
    bias_zeros = jnp.zeros((size,), dtype=jnp.float32)        # nn.Parameter init
    bias_rand = jax.random.normal(kb, (size,), dtype=jnp.float32)

    # Force the Pallas path on the small test shapes (min_kernel_bytes=0).
    out_zero = bias_forward(x, bias_zeros, min_kernel_bytes=0)
    out_rand = bias_forward(x, bias_rand, min_kernel_bytes=0)
    jax.block_until_ready(out_zero)
    jax.block_until_ready(out_rand)
    assert out_zero.shape == x.shape and out_zero.dtype == x.dtype
    assert jnp.allclose(out_zero, x)
    assert jnp.allclose(out_rand, x + bias_rand[None, None, :], atol=1e-6)

    # Tiny-input fast path (default threshold) gives the same result.
    out_fast = bias_forward(x, bias_rand)
    jax.block_until_ready(out_fast)
    assert jnp.allclose(out_fast, out_rand, atol=1e-6)

    # Remainder path: rows=10 not a multiple of 128//32=4 (bulk + XLA tail).
    x_odd = jax.random.normal(kx2, (10, size), dtype=jnp.float32)
    out_odd = bias_forward(x_odd, bias_rand, min_kernel_bytes=0)
    jax.block_until_ready(out_odd)
    assert out_odd.shape == x_odd.shape
    assert jnp.allclose(out_odd, x_odd + bias_rand[None, :], atol=1e-6)

    # Multi-step grid (>= 2 blocks) on a modest f32 input.
    x_big = jax.random.normal(kx3, (1024, size), dtype=jnp.float32)
    out_big = bias_forward(x_big, bias_rand, min_kernel_bytes=0)
    jax.block_until_ready(out_big)
    assert jnp.allclose(out_big, x_big + bias_rand[None, :], atol=1e-6)

    # bf16 path (dtype-aware sublane quantum).
    x_bf16 = jax.random.normal(kx4, (16, seq, size), dtype=jnp.bfloat16)
    b_bf16 = bias_rand.astype(jnp.bfloat16)
    out_bf16 = bias_forward(x_bf16, b_bf16, min_kernel_bytes=0)
    jax.block_until_ready(out_bf16)
    assert out_bf16.dtype == jnp.bfloat16
    assert jnp.allclose(out_bf16.astype(jnp.float32),
                        (x_bf16 + b_bf16).astype(jnp.float32), atol=1e-2)

    print("KERNEL_OK")
</pallas_src>

<mosaic_0001>
module attributes {stable_mosaic.version = 11 : i64} {
  func.func @_bias_add_kernel(%arg0: i32, %arg1: memref<8x128xf32, #tpu.memory_space<vmem>>, %arg2: memref<1x128xf32, #tpu.memory_space<vmem>>, %arg3: memref<8x128xf32, #tpu.memory_space<vmem>>) attributes {dimension_semantics = [#tpu.dimension_semantics<parallel>], iteration_bounds = array<i64: 1>, scalar_prefetch = 0 : i64, scratch_operands = 0 : i64, tpu.core_type = #tpu.core_type<tc>, window_params = [{transform_indices = @transform_0, window_bounds = array<i64: 8, 128>}, {pipeline_mode = #tpu.pipeline_mode<synchronous>, transform_indices = @transform_1, window_bounds = array<i64: 1, 128>}, {transform_indices = @transform_2, window_bounds = array<i64: 8, 128>}]} {
    %c0 = arith.constant 0 : index
    %c0_0 = arith.constant 0 : index
    %0 = vector.load %arg1[%c0, %c0_0] : memref<8x128xf32, #tpu.memory_space<vmem>>, vector<8x128xf32>
    %c0_1 = arith.constant 0 : index
    %c0_2 = arith.constant 0 : index
    %1 = vector.load %arg2[%c0_1, %c0_2] : memref<1x128xf32, #tpu.memory_space<vmem>>, vector<1x128xf32>
    %2 = vector.broadcast %1 : vector<1x128xf32> to vector<8x128xf32>
    %3 = arith.addf %0, %2 : vector<8x128xf32>
    %c0_3 = arith.constant 0 : index
    %c0_4 = arith.constant 0 : index
    %4 = vector.load %arg3[%c0_3, %c0_4] : memref<8x128xf32, #tpu.memory_space<vmem>>, vector<8x128xf32>
    tpu.vector_store %arg3[%c0_3, %c0_4], %3 {strides = array<i32>} : memref<8x128xf32, #tpu.memory_space<vmem>>, vector<8x128xf32>,
    return
  }
  func.func @transform_0(%arg0: i32) -> (i32, i32) {
    %c0_i32 = arith.constant 0 : i32
    %c0_i32_0 = arith.constant 0 : i32
    return %arg0, %c0_i32 : i32, i32
  }
  func.func @transform_1(%arg0: i32) -> (i32, i32) {
    %c0_i32 = arith.constant 0 : i32
    %c0_i32_0 = arith.constant 0 : i32
    %c0_i32_1 = arith.constant 0 : i32
    return %c0_i32, %c0_i32_0 : i32, i32
  }
  func.func @transform_2(%arg0: i32) -> (i32, i32) {
    %c0_i32 = arith.constant 0 : i32
    %c0_i32_0 = arith.constant 0 : i32
    return %arg0, %c0_i32 : i32, i32
  }
}

</mosaic_0001>

<llo_original>
// kernel: tpu_custom_call.1
$region0: #{tpu_custom_call.1}
  #allocation0 [shape = 'u32[]', space=smem, size = 0x4, offset = 0x4, fixed_abs, tag = 'smem constant byte address 0x4 - core index']
  #allocation1 [shape = 'u32[144,128]{1,0:T(1,128)}', space=vmem, size = 0x12000, scoped, tag = 'internal scratch']
  %s0 = inlined_call_operand.hbm [shape: f32[4,128], index: 0, kind: input, shape index: {}]
  %s1 = inlined_call_operand.vmem [shape: f32[1,128], index: 1, kind: input, shape index: {}]
  %s2 = inlined_call_operand.hbm [shape: f32[4,128], index: 2, kind: output, shape index: {}]
  %s3 = sld [smem:[#allocation0]]
  $region22: #{tpu_custom_call.1} parent=0
    _
  %s5 = ssub.s32 1, %s3
  %s6 = scalar_select 0, %s5, %s3
  $region1: #{tpu_custom_call.1} parent=0
    #allocation2 [shape = 'u8[4096]{0}', space=vmem, size = 0x1000, scoped, tag = 'input window, operand 0, single buffered']
    #allocation3 [shape = 's32[1]{0}', space=sflag, size = 0x4, scoped, tag = 'scoped memory for tpu_custom_call.1']
    #allocation4 [shape = 's32[1]{0}', space=sflag, size = 0x4, scoped, tag = 'scoped memory for tpu_custom_call.1']
    #allocation5 [shape = 'u8[4096]{0}', space=vmem, size = 0x1000, scoped, tag = 'output window, operand 0, single buffered']
    %7 = vsyncpa [#allocation3], 0
    %8 = vsyncpa [#allocation4], 0
    // Predicated region
    $region2: #{tpu_custom_call.1} parent=1 // pred_check
      _
    $region3: #{tpu_custom_call.1} parent=1 // pred_check_branch
      %10 = sbr.rel (0) target = $region5
    $region4: #{tpu_custom_call.1} parent=1 // pred_region
      %s12 = ssub.s32 128, 64
      %13 = vsyncadd [#allocation3], %s12
      %s14 = sshll.u32 [#allocation2], 4
      %s15 = int_to_ptr.vmem [resolvable:$true] %s14
      %20 = dma.hbm_to_vmem [thread:$0]  %s0, 64, %s15, [#allocation3], 64, 64, 4
    $region5: #{tpu_custom_call.1} parent=1 // pred_fallthru
      _
    // Predicated region
    $region6: #{tpu_custom_call.1} parent=1 // pred_check
      _
    $region7: #{tpu_custom_call.1} parent=1 // pred_check_branch
      %22 = sbr.rel (0) target = $region9
    $region8: #{tpu_custom_call.1} parent=1 // pred_region
      _
    $region9: #{tpu_custom_call.1} parent=1 // pred_fallthru
      _
    // Predicated region
    $region10: #{tpu_custom_call.1} parent=1 // pred_check
      _
    $region11: #{tpu_custom_call.1} parent=1 // pred_check_branch
      %24 = sbr.rel (0) target = $region13
    $region12: #{tpu_custom_call.1} parent=1 // pred_region
      %25 = dma.done [#allocation3], 128
    $region13: #{tpu_custom_call.1} parent=1 // pred_fallthru
      _
    %v26 = vld [vmem:[#allocation2] sm:$0xff]
    %v27 = vld [vmem:[%s1] sm:$0x1]
    %v29 = vlaneseq
    %v30 = vshrl.u32 %v29, 7
    %v31 = vsub.s32 0, %v30
    %v32 = vrot.slane %v27, %v31
    %v34 = vadd.f32 %v26, %v32
    %35 = vst [vmem:[#allocation5] sm:$0xff] %v34
    // Predicated region
    $region14: #{tpu_custom_call.1} parent=1 // pred_check
      _
    $region15: #{tpu_custom_call.1} parent=1 // pred_check_branch
      %37 = sbr.rel (0) target = $region17
    $region16: #{tpu_custom_call.1} parent=1 // pred_region
      %s39 = ssub.s32 128, 64
      %40 = vsyncadd [#allocation4], %s39
      %s41 = sshll.u32 [#allocation5], 4
      %s42 = int_to_ptr.vmem [resolvable:$true] %s41
      %47 = dma.vmem_to_hbm [thread:$0]  %s42, 64, %s2, [#allocation4], 64, 64, 4
    $region17: #{tpu_custom_call.1} parent=1 // pred_fallthru
      _
    // Predicated region
    $region18: #{tpu_custom_call.1} parent=1 // pred_check
      _
    $region19: #{tpu_custom_call.1} parent=1 // pred_check_branch
      %49 = sbr.rel (0) target = $region21
    $region20: #{tpu_custom_call.1} parent=1 // pred_region
      %50 = dma.done [#allocation4], 128
    $region21: #{tpu_custom_call.1} parent=1 // pred_fallthru
      _
    %51 = vsyncpa [#allocation3], 1
    %52 = vsyncpa [#allocation4], 1

</llo_original>
